<compile_context>
chip_gen: v5e
topology: v5e:2x2
jax: 0.10.0
libtpu: 0.0.40
codegen_flags: <defaults>
</compile_context>

<pallas_src>
import functools

import jax
import jax.numpy as jnp
import numpy as np
from jax.experimental import pallas as pl
from jax.experimental.pallas import tpu as pltpu


def _conv_block_kernel(xp_ref, w_ref, b_ref, g_ref, bt_ref, o_ref, *, seq_len, eps):
    T = seq_len
    xp = xp_ref[0]                      # (T+2, D) zero-padded input, f32
    D = xp.shape[-1]

    # Conv1d(k=3, pad=1) as 3 shifted matmuls: out[t] = sum_k x[t+k-1] @ W_k + b
    acc = jnp.dot(xp[0:T, :], w_ref[0], preferred_element_type=jnp.float32)
    acc = acc + jnp.dot(xp[1:1 + T, :], w_ref[1], preferred_element_type=jnp.float32)
    acc = acc + jnp.dot(xp[2:2 + T, :], w_ref[2], preferred_element_type=jnp.float32)

    # + conv bias, + residual (layer = identity mock, dropout = eval-mode identity)
    # TODO(synk): training-mode dropout (stochastic) not implemented; eval semantics used.
    y = acc + b_ref[...] + xp[1:1 + T, :]            # (T, D)

    # LayerNorm with torch-style unbiased std and (std + eps) denominator.
    mean = jnp.mean(y, axis=-1, keepdims=True)       # (T, 1)
    centered = y - mean
    var_unbiased = jnp.sum(centered * centered, axis=-1, keepdims=True) / (D - 1)
    std = jnp.sqrt(var_unbiased)
    out = g_ref[...] * centered / (std + eps) + bt_ref[...]

    o_ref[0] = out.astype(o_ref.dtype)


def convolution_block_forward(x, conv_w, conv_b, gamma, beta, *, eps=1e-6):
    """x: (B, T, D); conv_w: (D_out, D_in, K=3) PyTorch layout; conv_b/gamma/beta: (D,)."""
    B, T, D = x.shape
    K = conv_w.shape[-1]
    assert K == 3, "ConvolutionBlock default w=1 -> kernel size 3"
    assert conv_w.shape == (D, D, K)

    # One-time, trace-level layout prep (free): zero-pad the sequence axis and
    # pre-transpose the conv weight so the in-kernel dot is (T,D)@(D,D) with the
    # output channel in the lane axis.
    x_pad = jnp.pad(x.astype(jnp.float32), ((0, 0), (1, 1), (0, 0)))
    w_stack = jnp.transpose(conv_w.astype(jnp.float32), (2, 1, 0))   # (K, D_in, D_out)
    bias2 = conv_b.reshape(1, D).astype(jnp.float32)
    gamma2 = gamma.reshape(1, D).astype(jnp.float32)
    beta2 = beta.reshape(1, D).astype(jnp.float32)

    kernel = functools.partial(_conv_block_kernel, seq_len=T, eps=eps)

    return pl.pallas_call(
        kernel,
        out_shape=jax.ShapeDtypeStruct((B, T, D), jnp.float32),
        grid_spec=pltpu.PrefetchScalarGridSpec(
            num_scalar_prefetch=0,
            grid=(B,),
            in_specs=[
                pl.BlockSpec((1, T + 2, D), lambda b: (b, 0, 0)),   # padded input tile
                pl.BlockSpec((K, D, D), lambda b: (0, 0, 0)),       # conv taps (resident)
                pl.BlockSpec((1, D), lambda b: (0, 0)),             # conv bias (resident)
                pl.BlockSpec((1, D), lambda b: (0, 0)),             # gamma     (resident)
                pl.BlockSpec((1, D), lambda b: (0, 0)),             # beta      (resident)
            ],
            out_specs=pl.BlockSpec((1, T, D), lambda b: (b, 0, 0)),
        ),
        compiler_params=pltpu.CompilerParams(
            dimension_semantics=("parallel",)),
    )(x_pad, w_stack, bias2, gamma2, beta2)


def convolution_block_reference(x, conv_w, conv_b, gamma, beta, *, eps=1e-6):
    """Pure-JAX reference mirroring the PyTorch module (eval mode, identity layer)."""
    xt = jnp.transpose(x, (0, 2, 1))                                  # (B, D, T)
    conv = jax.lax.conv_general_dilated(
        xt, conv_w, window_strides=(1,), padding=((1, 1),),
        dimension_numbers=("NCH", "OIH", "NCH"))
    conv = conv + conv_b[None, :, None]
    conv = jnp.transpose(conv, (0, 2, 1))                             # (B, T, D)
    y = conv + x                                                      # residual
    mean = y.mean(-1, keepdims=True)
    centered = y - mean
    std = jnp.sqrt((centered * centered).sum(-1, keepdims=True) / (y.shape[-1] - 1))
    return gamma * centered / (std + eps) + beta


if __name__ == "__main__":
    # Small shapes consistent with the module: batch=2, seq=16, d_model=128 (lane-dense).
    B, T, D, K = 2, 16, 128, 3

    key0 = jax.random.PRNGKey(0)
    k1, k2, k3, k4, k5 = jax.random.split(key0, 5)

    x = jax.random.normal(k1, (B, T, D), dtype=jnp.float32)

    # PyTorch Conv1d init: uniform(-s, s), s = 1/sqrt(in_channels * kernel_size)
    s = 1.0 / np.sqrt(D * K)
    conv_w = jax.random.uniform(k2, (D, D, K), minval=-s, maxval=s, dtype=jnp.float32)
    conv_b = jax.random.uniform(k3, (D,), minval=-s, maxval=s, dtype=jnp.float32)

    # LayerNorm params (init = ones/zeros; perturb to exercise the affine math)
    gamma = 1.0 + 0.1 * jax.random.normal(k4, (D,), dtype=jnp.float32)
    beta = 0.1 * jax.random.normal(k5, (D,), dtype=jnp.float32)

    out = convolution_block_forward(x, conv_w, conv_b, gamma, beta)
    out = jax.block_until_ready(out)

    ref = convolution_block_reference(x, conv_w, conv_b, gamma, beta)
    np.testing.assert_allclose(np.asarray(out), np.asarray(ref), rtol=2e-4, atol=2e-4)

    assert out.shape == (B, T, D)
    print("KERNEL_OK")
</pallas_src>

<mosaic_0001>
module attributes {stable_mosaic.version = 11 : i64} {
  func.func @_conv_block_kernel(%arg0: i32, %arg1: memref<1x18x128xf32, #tpu.memory_space<vmem>>, %arg2: memref<3x128x128xf32, #tpu.memory_space<vmem>>, %arg3: memref<1x128xf32, #tpu.memory_space<vmem>>, %arg4: memref<1x128xf32, #tpu.memory_space<vmem>>, %arg5: memref<1x128xf32, #tpu.memory_space<vmem>>, %arg6: memref<1x16x128xf32, #tpu.memory_space<vmem>>) attributes {dimension_semantics = [#tpu.dimension_semantics<parallel>], iteration_bounds = array<i64: 2>, scalar_prefetch = 0 : i64, scratch_operands = 0 : i64, tpu.core_type = #tpu.core_type<tc>, window_params = [{transform_indices = @transform_0, window_bounds = array<i64: 1, 18, 128>}, {pipeline_mode = #tpu.pipeline_mode<synchronous>, transform_indices = @transform_1, window_bounds = array<i64: 3, 128, 128>}, {pipeline_mode = #tpu.pipeline_mode<synchronous>, transform_indices = @transform_2, window_bounds = array<i64: 1, 128>}, {pipeline_mode = #tpu.pipeline_mode<synchronous>, transform_indices = @transform_3, window_bounds = array<i64: 1, 128>}, {pipeline_mode = #tpu.pipeline_mode<synchronous>, transform_indices = @transform_4, window_bounds = array<i64: 1, 128>}, {transform_indices = @transform_5, window_bounds = array<i64: 1, 16, 128>}]} {
    %c0 = arith.constant 0 : index
    %c0_0 = arith.constant 0 : index
    %c0_1 = arith.constant 0 : index
    %0 = vector.load %arg1[%c0, %c0_0, %c0_1] : memref<1x18x128xf32, #tpu.memory_space<vmem>>, vector<1x18x128xf32>
    %1 = vector.shape_cast %0 : vector<1x18x128xf32> to vector<18x128xf32>
    %2 = vector.extract_strided_slice %1 {offsets = [0, 0], sizes = [16, 128], strides = [1, 1]} : vector<18x128xf32> to vector<16x128xf32>
    %c0_2 = arith.constant 0 : index
    %c0_3 = arith.constant 0 : index
    %c0_4 = arith.constant 0 : index
    %3 = vector.load %arg2[%c0_2, %c0_3, %c0_4] : memref<3x128x128xf32, #tpu.memory_space<vmem>>, vector<1x128x128xf32>
    %4 = vector.shape_cast %3 : vector<1x128x128xf32> to vector<128x128xf32>
    %cst = arith.constant dense<0.000000e+00> : vector<16x128xf32>
    %5 = tpu.matmul %2, %4, %cst {dimension_numbers = #tpu.dot_dimension_numbers<[1], [0], [0], [1], [0, 0, 1, 1], [], []>} : vector<16x128xf32>, vector<128x128xf32>, vector<16x128xf32> -> vector<16x128xf32>
    %6 = vector.extract_strided_slice %1 {offsets = [1, 0], sizes = [16, 128], strides = [1, 1]} : vector<18x128xf32> to vector<16x128xf32>
    %c1 = arith.constant 1 : index
    %c0_5 = arith.constant 0 : index
    %c0_6 = arith.constant 0 : index
    %7 = vector.load %arg2[%c1, %c0_5, %c0_6] : memref<3x128x128xf32, #tpu.memory_space<vmem>>, vector<1x128x128xf32>
    %8 = vector.shape_cast %7 : vector<1x128x128xf32> to vector<128x128xf32>
    %cst_7 = arith.constant dense<0.000000e+00> : vector<16x128xf32>
    %9 = tpu.matmul %6, %8, %cst_7 {dimension_numbers = #tpu.dot_dimension_numbers<[1], [0], [0], [1], [0, 0, 1, 1], [], []>} : vector<16x128xf32>, vector<128x128xf32>, vector<16x128xf32> -> vector<16x128xf32>
    %10 = arith.addf %5, %9 : vector<16x128xf32>
    %11 = vector.extract_strided_slice %1 {offsets = [2, 0], sizes = [16, 128], strides = [1, 1]} : vector<18x128xf32> to vector<16x128xf32>
    %c2 = arith.constant 2 : index
    %c0_8 = arith.constant 0 : index
    %c0_9 = arith.constant 0 : index
    %12 = vector.load %arg2[%c2, %c0_8, %c0_9] : memref<3x128x128xf32, #tpu.memory_space<vmem>>, vector<1x128x128xf32>
    %13 = vector.shape_cast %12 : vector<1x128x128xf32> to vector<128x128xf32>
    %cst_10 = arith.constant dense<0.000000e+00> : vector<16x128xf32>
    %14 = tpu.matmul %11, %13, %cst_10 {dimension_numbers = #tpu.dot_dimension_numbers<[1], [0], [0], [1], [0, 0, 1, 1], [], []>} : vector<16x128xf32>, vector<128x128xf32>, vector<16x128xf32> -> vector<16x128xf32>
    %15 = arith.addf %10, %14 : vector<16x128xf32>
    %c0_11 = arith.constant 0 : index
    %c0_12 = arith.constant 0 : index
    %16 = vector.load %arg3[%c0_11, %c0_12] : memref<1x128xf32, #tpu.memory_space<vmem>>, vector<1x128xf32>
    %17 = vector.broadcast %16 : vector<1x128xf32> to vector<16x128xf32>
    %18 = arith.addf %15, %17 : vector<16x128xf32>
    %19 = vector.extract_strided_slice %1 {offsets = [1, 0], sizes = [16, 128], strides = [1, 1]} : vector<18x128xf32> to vector<16x128xf32>
    %20 = arith.addf %18, %19 : vector<16x128xf32>
    %cst_13 = arith.constant dense<0.000000e+00> : vector<16xf32>
    %21 = vector.multi_reduction <add>, %20, %cst_13 [1] : vector<16x128xf32> to vector<16xf32>
    %22 = vector.shape_cast %21 : vector<16xf32> to vector<16x1xf32>
    %cst_14 = arith.constant 1.280000e+02 : f32
    %23 = vector.broadcast %cst_14 : f32 to vector<16x1xf32>
    %24 = arith.divf %22, %23 : vector<16x1xf32>
    %25 = vector.broadcast %24 : vector<16x1xf32> to vector<16x128xf32>
    %26 = arith.subf %20, %25 : vector<16x128xf32>
    %27 = arith.mulf %26, %26 : vector<16x128xf32>
    %cst_15 = arith.constant dense<0.000000e+00> : vector<16xf32>
    %28 = vector.multi_reduction <add>, %27, %cst_15 [1] : vector<16x128xf32> to vector<16xf32>
    %29 = vector.shape_cast %28 : vector<16xf32> to vector<16x1xf32>
    %cst_16 = arith.constant 1.270000e+02 : f32
    %30 = vector.broadcast %cst_16 : f32 to vector<16x1xf32>
    %31 = arith.divf %29, %30 : vector<16x1xf32>
    %32 = math.sqrt %31 : vector<16x1xf32>
    %c0_17 = arith.constant 0 : index
    %c0_18 = arith.constant 0 : index
    %33 = vector.load %arg4[%c0_17, %c0_18] : memref<1x128xf32, #tpu.memory_space<vmem>>, vector<1x128xf32>
    %34 = vector.broadcast %33 : vector<1x128xf32> to vector<16x128xf32>
    %35 = arith.mulf %34, %26 : vector<16x128xf32>
    %cst_19 = arith.constant 9.99999997E-7 : f32
    %36 = vector.broadcast %cst_19 : f32 to vector<16x1xf32>
    %37 = arith.addf %32, %36 : vector<16x1xf32>
    %38 = vector.broadcast %37 : vector<16x1xf32> to vector<16x128xf32>
    %39 = arith.divf %35, %38 : vector<16x128xf32>
    %c0_20 = arith.constant 0 : index
    %c0_21 = arith.constant 0 : index
    %40 = vector.load %arg5[%c0_20, %c0_21] : memref<1x128xf32, #tpu.memory_space<vmem>>, vector<1x128xf32>
    %41 = vector.broadcast %40 : vector<1x128xf32> to vector<16x128xf32>
    %42 = arith.addf %39, %41 : vector<16x128xf32>
    %c0_22 = arith.constant 0 : index
    %c0_23 = arith.constant 0 : index
    %c0_24 = arith.constant 0 : index
    %43 = vector.load %arg6[%c0_22, %c0_23, %c0_24] : memref<1x16x128xf32, #tpu.memory_space<vmem>>, vector<1x16x128xf32>
    %44 = vector.shape_cast %43 : vector<1x16x128xf32> to vector<16x128xf32>
    %45 = vector.shape_cast %42 : vector<16x128xf32> to vector<1x16x128xf32>
    tpu.vector_store %arg6[%c0_22, %c0_23, %c0_24], %45 {strides = array<i32>} : memref<1x16x128xf32, #tpu.memory_space<vmem>>, vector<1x16x128xf32>,
    return
  }
  func.func @transform_0(%arg0: i32) -> (i32, i32, i32) {
    %c0_i32 = arith.constant 0 : i32
    %c0_i32_0 = arith.constant 0 : i32
    %c0_i32_1 = arith.constant 0 : i32
    return %arg0, %c0_i32, %c0_i32_0 : i32, i32, i32
  }
  func.func @transform_1(%arg0: i32) -> (i32, i32, i32) {
    %c0_i32 = arith.constant 0 : i32
    %c0_i32_0 = arith.constant 0 : i32
    %c0_i32_1 = arith.constant 0 : i32
    %c0_i32_2 = arith.constant 0 : i32
    return %c0_i32, %c0_i32_0, %c0_i32_1 : i32, i32, i32
  }
  func.func @transform_2(%arg0: i32) -> (i32, i32) {
    %c0_i32 = arith.constant 0 : i32
    %c0_i32_0 = arith.constant 0 : i32
    %c0_i32_1 = arith.constant 0 : i32
    return %c0_i32, %c0_i32_0 : i32, i32
  }
  func.func @transform_3(%arg0: i32) -> (i32, i32) {
    %c0_i32 = arith.constant 0 : i32
    %c0_i32_0 = arith.constant 0 : i32
    %c0_i32_1 = arith.constant 0 : i32
    return %c0_i32, %c0_i32_0 : i32, i32
  }
  func.func @transform_4(%arg0: i32) -> (i32, i32) {
    %c0_i32 = arith.constant 0 : i32
    %c0_i32_0 = arith.constant 0 : i32
    %c0_i32_1 = arith.constant 0 : i32
    return %c0_i32, %c0_i32_0 : i32, i32
  }
  func.func @transform_5(%arg0: i32) -> (i32, i32, i32) {
    %c0_i32 = arith.constant 0 : i32
    %c0_i32_0 = arith.constant 0 : i32
    %c0_i32_1 = arith.constant 0 : i32
    return %arg0, %c0_i32, %c0_i32_0 : i32, i32, i32
  }
}

</mosaic_0001>

<llo_original>
// kernel: tpu_custom_call.1
$region0: #{tpu_custom_call.1}
  #allocation0 [shape = 'u32[]', space=smem, size = 0x4, offset = 0x4, fixed_abs, tag = 'smem constant byte address 0x4 - core index']
  #allocation1 [shape = 'u32[72,128]{1,0:T(1,128)}', space=vmem, size = 0x9000, scoped, tag = 'internal scratch']
  %s0 = inlined_call_operand.vmem [shape: f32[2,18,128], index: 0, kind: input, shape index: {}]
  %s1 = inlined_call_operand.hbm [shape: f32[3,128,128], index: 1, kind: input, shape index: {}]
  %s2 = inlined_call_operand.vmem [shape: f32[1,128], index: 2, kind: input, shape index: {}]
  %s3 = inlined_call_operand.vmem [shape: f32[1,128], index: 3, kind: input, shape index: {}]
  %s4 = inlined_call_operand.vmem [shape: f32[1,128], index: 4, kind: input, shape index: {}]
  %s5 = inlined_call_operand.hbm [shape: f32[2,16,128], index: 5, kind: output, shape index: {}]
  %s6 = sld [smem:[#allocation0]]
  $region57: #{tpu_custom_call.1} parent=0
    _
  %s8 = ssub.s32 1, %s6
  %s9 = scalar_select 0, %s8, %s6
  $region1: #{tpu_custom_call.1} parent=0
    #allocation2 [shape = 'u8[196608]{0}', space=vmem, size = 0x30000, scoped, tag = 'input window, operand 1, single buffered']
    #allocation3 [shape = 's32[2]{0}', space=sflag, size = 0x8, scoped, tag = 'scoped memory for tpu_custom_call.1']
    #allocation4 [shape = 's32[2]{0}', space=sflag, size = 0x8, scoped, tag = 'scoped memory for tpu_custom_call.1']
    #allocation5 [shape = 'u8[16384]{0}', space=vmem, size = 0x4000, scoped, tag = 'output window, operand 0']
    %10 = vsyncpa [#allocation3], 0
    %11 = vsyncpa [#allocation4], 0
    %s12 = scalar_lea.sflag [#allocation4], 1
    %13 = vsyncpa %s12, 0
    loop: start=0, step=1, limit=4
    $region2: #{tpu_custom_call.1} parent=1 // loop_pre_header
      _
    $region3: #{tpu_custom_call.1} parent=1 // loop_header
      %s15 = sphi 0, %s19
      %p16 = scmp.ge.s32.totalorder %s15, 4
      %s25 = sphi 0, %s27
      %s28 = sphi 0, %s25
      %s29 = sphi 0, %s28
      %s45 = sphi 0, %s29
      %s49 = sphi 0, %s49
      %s51 = sphi 0, %s49
      %s52 = sphi 0, %s51
      %s66 = sphi 0, %s52
      %s70 = sphi 0, %s70
      %s72 = sphi 0, %s70
      %s73 = sphi 0, %s72
      %s87 = sphi 0, %s73
      %s91 = sphi 0, %s91
      %s93 = sphi 0, %s91
      %s94 = sphi 0, %s93
      %s108 = sphi 0, %s94
      %s112 = sphi 0, %s112
      %s114 = sphi 0, %s112
      %s115 = sphi 0, %s114
      %s129 = sphi 0, %s115
      %s135 = sphi 0, %s137
      %s138 = sphi 0, %s135
      %s139 = sphi 0, %s138
      %s155 = sphi 0, %s139
    $region4: #{tpu_custom_call.1} parent=1 // loop_header_branch
      %18 = sbr.rel (%p16) target = $region8
    $region5: #{tpu_custom_call.1} parent=1 // loop_body
      %s20 = ssub.s32 %s15, 1
      %s21 = ssub.s32 %s15, 2
      %s22 = sadd.s32 %s15, 1
      %s23 = ssub.s32 %s15, %s22
      %p24 = scmp.eq.s32.totalorder %s23, 0
      %s26 = sadd.s32 %s25, 1
      %s27 = scalar_select %p24, %s25, %s26
      %p30 = pneg %p24
      %p31 = scmp.eq.s32.totalorder %s15, 1
      %p32 = por %p30, %p31
      %p33 = scmp.ne.s32.totalorder %s25, %s28
      %p34 = scmp.eq.s32.totalorder %s15, 0
      %p35 = por %p33, %p34
      %p36 = scmp.ne.s32.totalorder %s25, %s28
      %p37 = scmp.eq.s32.totalorder %s20, 1
      %p38 = por %p36, %p37
      %p39 = scmp.ne.s32.totalorder %s28, %s29
      %p40 = scmp.eq.s32.totalorder %s20, 0
      %p41 = por %p39, %p40
      %p42 = scmp.ne.s32.totalorder %s28, %s29
      %p43 = scmp.eq.s32.totalorder %s21, 1
      %p44 = por %p42, %p43
      %p46 = scmp.ne.s32.totalorder %s29, %s45
      %p47 = scmp.eq.s32.totalorder %s21, 0
      %p48 = por %p46, %p47
      %s50 = sadd.s32 %s49, 1
      %p53 = scmp.eq.s32.totalorder %s15, 1
      %p54 = scmp.ne.s32.totalorder %s49, %s51
      %p55 = scmp.eq.s32.totalorder %s15, 0
      %p56 = por %p54, %p55
      %p57 = scmp.ne.s32.totalorder %s49, %s51
      %p58 = scmp.eq.s32.totalorder %s20, 1
      %p59 = por %p57, %p58
      %p60 = scmp.ne.s32.totalorder %s51, %s52
      %p61 = scmp.eq.s32.totalorder %s20, 0
      %p62 = por %p60, %p61
      %p63 = scmp.ne.s32.totalorder %s51, %s52
      %p64 = scmp.eq.s32.totalorder %s21, 1
      %p65 = por %p63, %p64
      %p67 = scmp.ne.s32.totalorder %s52, %s66
      %p68 = scmp.eq.s32.totalorder %s21, 0
      %p69 = por %p67, %p68
      %s71 = sadd.s32 %s70, 1
      %p74 = scmp.eq.s32.totalorder %s15, 1
      %p75 = scmp.ne.s32.totalorder %s70, %s72
      %p76 = scmp.eq.s32.totalorder %s15, 0
      %p77 = por %p75, %p76
      %p78 = scmp.ne.s32.totalorder %s70, %s72
      %p79 = scmp.eq.s32.totalorder %s20, 1
      %p80 = por %p78, %p79
      %p81 = scmp.ne.s32.totalorder %s72, %s73
      %p82 = scmp.eq.s32.totalorder %s20, 0
      %p83 = por %p81, %p82
      %p84 = scmp.ne.s32.totalorder %s72, %s73
      %p85 = scmp.eq.s32.totalorder %s21, 1
      %p86 = por %p84, %p85
      %p88 = scmp.ne.s32.totalorder %s73, %s87
      %p89 = scmp.eq.s32.totalorder %s21, 0
      %p90 = por %p88, %p89
      %s92 = sadd.s32 %s91, 1
      %p95 = scmp.eq.s32.totalorder %s15, 1
      %p96 = scmp.ne.s32.totalorder %s91, %s93
      %p97 = scmp.eq.s32.totalorder %s15, 0
      %p98 = por %p96, %p97
      %p99 = scmp.ne.s32.totalorder %s91, %s93
      %p100 = scmp.eq.s32.totalorder %s20, 1
      %p101 = por %p99, %p100
      %p102 = scmp.ne.s32.totalorder %s93, %s94
      %p103 = scmp.eq.s32.totalorder %s20, 0
      %p104 = por %p102, %p103
      %p105 = scmp.ne.s32.totalorder %s93, %s94
      %p106 = scmp.eq.s32.totalorder %s21, 1
      %p107 = por %p105, %p106
      %p109 = scmp.ne.s32.totalorder %s94, %s108
      %p110 = scmp.eq.s32.totalorder %s21, 0
      %p111 = por %p109, %p110
      %s113 = sadd.s32 %s112, 1
      %p116 = scmp.eq.s32.totalorder %s15, 1
      %p117 = scmp.ne.s32.totalorder %s112, %s114
      %p118 = scmp.eq.s32.totalorder %s15, 0
      %p119 = por %p117, %p118
      %p120 = scmp.ne.s32.totalorder %s112, %s114
      %p121 = scmp.eq.s32.totalorder %s20, 1
      %p122 = por %p120, %p121
      %p123 = scmp.ne.s32.totalorder %s114, %s115
      %p124 = scmp.eq.s32.totalorder %s20, 0
      %p125 = por %p123, %p124
      %p126 = scmp.ne.s32.totalorder %s114, %s115
      %p127 = scmp.eq.s32.totalorder %s21, 1
      %p128 = por %p126, %p127
      %p130 = scmp.ne.s32.totalorder %s115, %s129
      %p131 = scmp.eq.s32.totalorder %s21, 0
      %p132 = por %p130, %p131
      %s133 = ssub.s32 %s15, %s22
      %p134 = scmp.eq.s32.totalorder %s133, 0
      %s136 = sadd.s32 %s135, 1
      %s137 = scalar_select %p134, %s135, %s136
      %p140 = pneg %p134
      %p141 = scmp.eq.s32.totalorder %s15, 1
      %p142 = por %p140, %p141
      %p143 = scmp.ne.s32.totalorder %s135, %s138
      %p144 = scmp.eq.s32.totalorder %s15, 0
      %p145 = por %p143, %p144
      %p146 = scmp.ne.s32.totalorder %s135, %s138
      %p147 = scmp.eq.s32.totalorder %s20, 1
      %p148 = por %p146, %p147
      %p149 = scmp.ne.s32.totalorder %s138, %s139
      %p150 = scmp.eq.s32.totalorder %s20, 0
      %p151 = por %p149, %p150
      %p152 = scmp.ne.s32.totalorder %s138, %s139
      %p153 = scmp.eq.s32.totalorder %s21, 1
      %p154 = por %p152, %p153
      %p156 = scmp.ne.s32.totalorder %s139, %s155
      %p157 = scmp.eq.s32.totalorder %s21, 0
      %p158 = por %p156, %p157
      %p159 = scmp.le.s32.totalorder 1, %s15
      %p160 = scmp.lt.s32.totalorder %s15, 3
      %p161 = pnand %p159, %p160
      %p162 = pneg %p161
      // Predicated region
      $region9: #{tpu_custom_call.1} parent=5 // pred_check
        _
      $region10: #{tpu_custom_call.1} parent=5 // pred_check_branch
        %164 = sbr.rel (%p161) target = $region12
      $region11: #{tpu_custom_call.1} parent=5 // pred_region
        %s165 = ssub.s32 %s15, 1
        // Predicated region
        $region13: #{tpu_custom_call.1} parent=11 // pred_check
          %p166 = pneg %p62
        $region14: #{tpu_custom_call.1} parent=11 // pred_check_branch
          %168 = sbr.rel (%p166) target = $region16
        $region15: #{tpu_custom_call.1} parent=11 // pred_region
          %170 = vsyncadd [#allocation3], 0
          %s171 = sshll.u32 %s1, 4
          %s172 = int_to_ptr.hbm [resolvable:$true] %s171
          %s173 = sshll.u32 [#allocation2], 4
          %s174 = int_to_ptr.vmem [resolvable:$true] %s173
          %179 = dma.hbm_to_vmem [thread:$0]  %s172, 6144, %s174, [#allocation3], 128, 128, 8
        $region16: #{tpu_custom_call.1} parent=11 // pred_fallthru
          _
        // Predicated region
        $region17: #{tpu_custom_call.1} parent=11 // pred_check
          %p180 = pneg %p83
        $region18: #{tpu_custom_call.1} parent=11 // pred_check_branch
          %182 = sbr.rel (%p180) target = $region20
        $region19: #{tpu_custom_call.1} parent=11 // pred_region
          _
        $region20: #{tpu_custom_call.1} parent=11 // pred_fallthru
          _
        // Predicated region
        $region21: #{tpu_custom_call.1} parent=11 // pred_check
          %p183 = pneg %p104
        $region22: #{tpu_custom_call.1} parent=11 // pred_check_branch
          %185 = sbr.rel (%p183) target = $region24
        $region23: #{tpu_custom_call.1} parent=11 // pred_region
          _
        $region24: #{tpu_custom_call.1} parent=11 // pred_fallthru
          _
        // Predicated region
        $region25: #{tpu_custom_call.1} parent=11 // pred_check
          %p186 = pneg %p125
        $region26: #{tpu_custom_call.1} parent=11 // pred_check_branch
          %188 = sbr.rel (%p186) target = $region28
        $region27: #{tpu_custom_call.1} parent=11 // pred_region
          _
        $region28: #{tpu_custom_call.1} parent=11 // pred_fallthru
          _
      $region12: #{tpu_custom_call.1} parent=5 // pred_fallthru
        _
      %p189 = scmp.lt.s32.totalorder %s15, 2
      // Predicated region
      $region29: #{tpu_custom_call.1} parent=5 // pred_check
        %p190 = pneg %p189
      $region30: #{tpu_custom_call.1} parent=5 // pred_check_branch
        %192 = sbr.rel (%p190) target = $region32
      $region31: #{tpu_custom_call.1} parent=5 // pred_region
        // Predicated region
        $region33: #{tpu_custom_call.1} parent=31 // pred_check
          %p193 = pneg %p35
        $region34: #{tpu_custom_call.1} parent=31 // pred_check_branch
          %195 = sbr.rel (%p193) target = $region36
        $region35: #{tpu_custom_call.1} parent=31 // pred_region
          %p196 = scmp.lt.s32.totalorder %s15, 1
          %s197 = scalar_select %p196, %s15, 1
          %s198 = smul.addr %s197, 3
          %s199 = smul.addr %s198, 8
          %s200 = scalar_lea.vmem %s0, %s199
        $region36: #{tpu_custom_call.1} parent=31 // pred_fallthru
          _
      $region32: #{tpu_custom_call.1} parent=5 // pred_fallthru
        _
      %p201 = scmp.le.s32.totalorder 1, %s15
      %p202 = scmp.lt.s32.totalorder %s15, 3
      %p203 = pnand %p201, %p202
      %p204 = pneg %p203
      // Predicated region
      $region37: #{tpu_custom_call.1} parent=5 // pred_check
        _
      $region38: #{tpu_custom_call.1} parent=5 // pred_check_branch
        %206 = sbr.rel (%p203) target = $region40
      $region39: #{tpu_custom_call.1} parent=5 // pred_region
        %s207 = ssub.s32 %s15, 1
        // Predicated region
        $region41: #{tpu_custom_call.1} parent=39 // pred_check
          %p208 = pneg %p62
        $region42: #{tpu_custom_call.1} parent=39 // pred_check_branch
          %210 = sbr.rel (%p208) target = $region44
        $region43: #{tpu_custom_call.1} parent=39 // pred_region
          %212 = dma.done [#allocation3], 6144
        $region44: #{tpu_custom_call.1} parent=39 // pred_fallthru
          _
        %p213 = scmp.lt.s32.totalorder %s20, 1
        %s214 = scalar_select %p213, %s20, 1
        %s215 = smul.addr %s214, 3
        %s216 = smul.addr %s215, 8
        %s217 = scalar_lea.vmem %s0, %s216
        %p218 = pneg %p41
        %p219 = pneg %p38
        %p220 = pneg %p62
        %p221 = pneg %p59
        %p222 = pneg %p83
        %p223 = pneg %p80
        %p224 = pneg %p104
        %p225 = pneg %p101
        %p226 = pneg %p125
        %p227 = pneg %p122
        %p228 = pneg %p151
        %p229 = pneg %p148
        %s230 = sand.u32 %s138, 1
        %s231 = scalar_lea.sflag [#allocation4], %s230
        %s232 = sand.u32 %s138, 1
        %s233 = smul.addr %s232, 16
        %s234 = scalar_lea.vmem [#allocation5], %s233
        %p235 = scmp.lt.s32.totalorder %s20, 1
        %s236 = scalar_select %p235, %s20, 1
        %s237 = smul.addr %s236, 3
        %s238 = smul.addr %s237, 8
        %s239 = scalar_lea.vmem %s0, %s238
        %v240 = vld [vmem:[%s239] sm:$0xff]
        %v241 = vld [vmem:[%s239 + $0x8] sm:$0xff]
        %v242 = vld [vmem:[%s239 + $0x10] sm:$0x3]
        %v243 = vld [vmem:[#allocation2] sm:$0xff]
        %v244 = vld [vmem:[#allocation2 + $0x8] sm:$0xff]
        %v245 = vld [vmem:[#allocation2 + $0x10] sm:$0xff]
        %v246 = vld [vmem:[#allocation2 + $0x18] sm:$0xff]
        %v247 = vld [vmem:[#allocation2 + $0x20] sm:$0xff]
        %v248 = vld [vmem:[#allocation2 + $0x28] sm:$0xff]
        %v249 = vld [vmem:[#allocation2 + $0x30] sm:$0xff]
        %v250 = vld [vmem:[#allocation2 + $0x38] sm:$0xff]
        %v251 = vld [vmem:[#allocation2 + $0x40] sm:$0xff]
        %v252 = vld [vmem:[#allocation2 + $0x48] sm:$0xff]
        %v253 = vld [vmem:[#allocation2 + $0x50] sm:$0xff]
        %v254 = vld [vmem:[#allocation2 + $0x58] sm:$0xff]
        %v255 = vld [vmem:[#allocation2 + $0x60] sm:$0xff]
        %v256 = vld [vmem:[#allocation2 + $0x68] sm:$0xff]
        %v257 = vld [vmem:[#allocation2 + $0x70] sm:$0xff]
        %v258 = vld [vmem:[#allocation2 + $0x78] sm:$0xff]
        %s259 = scalar_lea.vmem [#allocation2], 128
        %v260 = vld [vmem:[%s259] sm:$0xff]
        %v261 = vld [vmem:[%s259 + $0x8] sm:$0xff]
        %v262 = vld [vmem:[%s259 + $0x10] sm:$0xff]
        %v263 = vld [vmem:[%s259 + $0x18] sm:$0xff]
        %v264 = vld [vmem:[%s259 + $0x20] sm:$0xff]
        %v265 = vld [vmem:[%s259 + $0x28] sm:$0xff]
        %v266 = vld [vmem:[%s259 + $0x30] sm:$0xff]
        %v267 = vld [vmem:[%s259 + $0x38] sm:$0xff]
        %v268 = vld [vmem:[%s259 + $0x40] sm:$0xff]
        %v269 = vld [vmem:[%s259 + $0x48] sm:$0xff]
        %v270 = vld [vmem:[%s259 + $0x50] sm:$0xff]
        %v271 = vld [vmem:[%s259 + $0x58] sm:$0xff]
        %v272 = vld [vmem:[%s259 + $0x60] sm:$0xff]
        %v273 = vld [vmem:[%s259 + $0x68] sm:$0xff]
        %v274 = vld [vmem:[%s259 + $0x70] sm:$0xff]
        %v275 = vld [vmem:[%s259 + $0x78] sm:$0xff]
        %vm279 = vcmask 1046528
        %v280 = vrot.slane %v240, 1
        %v281 = vrot.slane %v241, 1
        %v282 = vsel %vm279, %v280, %v281
        %v283 = vrot.slane %v242, 1
        %v284 = vsel %vm279, %v281, %v283
        %287 = vmatpush.msra.mxu0 %v275
        %288 = vmatpush.msra.mxu0 %v274
        %289 = vmatpush.msra.mxu0 %v273
        %290 = vmatpush.msra.mxu0 %v272
        %291 = vmatpush.msra.mxu0 %v271
        %292 = vmatpush.msra.mxu0 %v270
        %293 = vmatpush.msra.mxu0 %v269
        %294 = vmatpush.msra.mxu0 %v268
        %295 = vmatpush.msra.mxu0 %v267
        %296 = vmatpush.msra.mxu0 %v266
        %297 = vmatpush.msra.mxu0 %v265
        %298 = vmatpush.msra.mxu0 %v264
        %299 = vmatpush.msra.mxu0 %v263
        %300 = vmatpush.msra.mxu0 %v262
        %301 = vmatpush.msra.mxu0 %v261
        %302 = vmatpush.msra.mxu0 %v260
        %303 = vmatmul.f32.gmra.mxu0 %v282
        %v304 = vpop.f32.mrf.mxu0
        %v305 = vadd.f32 0.0, %v304
        %306 = vmatmul.f32.gmra.mxu0 %v284
        %v307 = vpop.f32.mrf.mxu0
        %v308 = vadd.f32 0.0, %v307
        %309 = vdwg.mxu0
        %310 = vmatpush.msra.mxu0 %v258
        %311 = vmatpush.msra.mxu0 %v257
        %312 = vmatpush.msra.mxu0 %v256
        %313 = vmatpush.msra.mxu0 %v255
        %314 = vmatpush.msra.mxu0 %v254
        %315 = vmatpush.msra.mxu0 %v253
        %316 = vmatpush.msra.mxu0 %v252
        %317 = vmatpush.msra.mxu0 %v251
        %318 = vmatpush.msra.mxu0 %v250
        %319 = vmatpush.msra.mxu0 %v249
        %320 = vmatpush.msra.mxu0 %v248
        %321 = vmatpush.msra.mxu0 %v247
        %322 = vmatpush.msra.mxu0 %v246
        %323 = vmatpush.msra.mxu0 %v245
        %324 = vmatpush.msra.mxu0 %v244
        %325 = vmatpush.msra.mxu0 %v243
        %326 = vmatmul.f32.gmra.mxu0 %v240
        %v327 = vpop.f32.mrf.mxu0
        %v328 = vadd.f32 %v305, %v327
        %329 = vmatmul.f32.gmra.mxu0 %v241
        %v330 = vpop.f32.mrf.mxu0
        %v331 = vadd.f32 %v308, %v330
        %332 = vdwg.mxu0
        %s333 = scalar_lea.vmem [#allocation2], 256
        %v334 = vld [vmem:[%s333] sm:$0xff]
        %v335 = vld [vmem:[%s333 + $0x8] sm:$0xff]
        %v336 = vld [vmem:[%s333 + $0x10] sm:$0xff]
        %v337 = vld [vmem:[%s333 + $0x18] sm:$0xff]
        %v338 = vld [vmem:[%s333 + $0x20] sm:$0xff]
        %v339 = vld [vmem:[%s333 + $0x28] sm:$0xff]
        %v340 = vld [vmem:[%s333 + $0x30] sm:$0xff]
        %v341 = vld [vmem:[%s333 + $0x38] sm:$0xff]
        %v342 = vld [vmem:[%s333 + $0x40] sm:$0xff]
        %v343 = vld [vmem:[%s333 + $0x48] sm:$0xff]
        %v344 = vld [vmem:[%s333 + $0x50] sm:$0xff]
        %v345 = vld [vmem:[%s333 + $0x58] sm:$0xff]
        %v346 = vld [vmem:[%s333 + $0x60] sm:$0xff]
        %v347 = vld [vmem:[%s333 + $0x68] sm:$0xff]
        %v348 = vld [vmem:[%s333 + $0x70] sm:$0xff]
        %v349 = vld [vmem:[%s333 + $0x78] sm:$0xff]
        %vm350 = vcmask 1045504
        %v351 = vrot.slane %v240, 2
        %v352 = vrot.slane %v241, 2
        %v353 = vsel %vm350, %v351, %v352
        %v354 = vrot.slane %v242, 2
        %v355 = vsel %vm350, %v352, %v354
        %358 = vmatpush.msra.mxu0 %v349
        %359 = vmatpush.msra.mxu0 %v348
        %360 = vmatpush.msra.mxu0 %v347
        %361 = vmatpush.msra.mxu0 %v346
        %362 = vmatpush.msra.mxu0 %v345
        %363 = vmatpush.msra.mxu0 %v344
        %364 = vmatpush.msra.mxu0 %v343
        %365 = vmatpush.msra.mxu0 %v342
        %366 = vmatpush.msra.mxu0 %v341
        %367 = vmatpush.msra.mxu0 %v340
        %368 = vmatpush.msra.mxu0 %v339
        %369 = vmatpush.msra.mxu0 %v338
        %370 = vmatpush.msra.mxu0 %v337
        %371 = vmatpush.msra.mxu0 %v336
        %372 = vmatpush.msra.mxu0 %v335
        %373 = vmatpush.msra.mxu0 %v334
        %374 = vmatmul.f32.gmra.mxu0 %v353
        %v375 = vpop.f32.mrf.mxu0
        %v376 = vadd.f32 0.0, %v375
        %377 = vmatmul.f32.gmra.mxu0 %v355
        %v378 = vpop.f32.mrf.mxu0
        %v379 = vadd.f32 0.0, %v378
        %380 = vdwg.mxu0
        %v381 = vadd.f32 %v328, %v376
        %v382 = vadd.f32 %v331, %v379
        %v383 = vld [vmem:[%s2] sm:$0x1]
        %v385 = vperm.slane %v383, 0
        %v387 = vadd.f32 %v381, %v385
        %v388 = vadd.f32 %v382, %v385
        %v389 = vadd.f32 %v387, %v282
        %v390 = vadd.f32 %v388, %v284
        %391 = vadd.xlane.f32.xlu0 %v389
        %v392 = vpop.xlane.xlu0 %391
        %393 = vadd.xlane.f32.xlu0 %v390
        %v394 = vpop.xlane.xlu0 %393
        %v395 = vrcp.pop 128.0
        %v396 = vmul.f32 128.0, %v395
        %v397 = vsub.f32 1.0, %v396
        %v398 = vmul.f32 %v395, %v397
        %v399 = vadd.f32 %v395, %v398
        %vm400 = vweird.f32 %v395
        %v401 = vsel %vm400, %v395, %v399
        %v402 = vmul.f32 %v392, %v401
        %v403 = vmul.f32 %v394, %v401
        %v404 = vsub.f32 %v389, %v402
        %v405 = vsub.f32 %v390, %v403
        %v406 = vmul.f32 %v404, %v404
        %v407 = vmul.f32 %v405, %v405
        %408 = vadd.xlane.f32.xlu0 %v406
        %v409 = vpop.xlane.xlu0 %408
        %410 = vadd.xlane.f32.xlu0 %v407
        %v411 = vpop.xlane.xlu0 %410
        %v412 = vrcp.pop 127.0
        %v413 = vmul.f32 127.0, %v412
        %v414 = vsub.f32 1.0, %v413
        %v415 = vmul.f32 %v412, %v414
        %v416 = vadd.f32 %v412, %v415
        %vm417 = vweird.f32 %v412
        %v418 = vsel %vm417, %v412, %v416
        %v419 = vmul.f32 %v409, %v418
        %v420 = vmul.f32 %v411, %v418
        %v421 = vrsqrt.pop %v419
        %v422 = vmul.f32 %v421, %v419
        %v423 = vmul.f32 %v422, %v421
        %v424 = vmul.f32 0.5, %v423
        %v425 = vsub.f32 1.5, %v424
        %v426 = vmul.f32 %v421, %v425
        %v427 = vmul.f32 %v419, %v426
        %vm428 = vcmp.eq.f32.partialorder %v419, inf
        %v429 = vsel %vm428, %v419, %v427
        %vm430 = vcmp.eq.f32.partialorder %v419, 0.0
        %v431 = vand.u32 %v419, 2147483648
        %v432 = vsel %vm430, %v431, %v429
        %v433 = vrsqrt.pop %v420
        %v434 = vmul.f32 %v433, %v420
        %v435 = vmul.f32 %v434, %v433
        %v436 = vmul.f32 0.5, %v435
        %v437 = vsub.f32 1.5, %v436
        %v438 = vmul.f32 %v433, %v437
        %v439 = vmul.f32 %v420, %v438
        %vm440 = vcmp.eq.f32.partialorder %v420, inf
        %v441 = vsel %vm440, %v420, %v439
        %vm442 = vcmp.eq.f32.partialorder %v420, 0.0
        %v443 = vand.u32 %v420, 2147483648
        %v444 = vsel %vm442, %v443, %v441
        %v445 = vld [vmem:[%s3] sm:$0x1]
        %v447 = vperm.slane %v445, 0
        %v449 = vmul.f32 %v447, %v404
        %v450 = vmul.f32 %v447, %v405
        %v451 = vadd.f32 %v432, 1e-06
        %v452 = vadd.f32 %v444, 1e-06
        %v453 = vrcp.pop %v451
        %v454 = vmul.f32 %v451, %v453
        %v455 = vsub.f32 1.0, %v454
        %v456 = vmul.f32 %v453, %v455
        %v457 = vadd.f32 %v453, %v456
        %vm458 = vweird.f32 %v451
        %vm459 = vweird.f32 %v453
        %vm460 = vmor %vm458, %vm459
        %v461 = vsel %vm460, %v453, %v457
        %v462 = vand.u32 2147483647, %v451
        %vm463 = vcmp.eq.f32.partialorder %v462, 8.507059e+37
        %v464 = vand.u32 %v451, 2147483648
        %v465 = vor.u32 1.1754944e-38, %v464
        %v466 = vsel %vm463, %v465, %v461
        %v467 = vmul.f32 %v449, %v466
        %v468 = vrcp.pop %v452
        %v469 = vmul.f32 %v452, %v468
        %v470 = vsub.f32 1.0, %v469
        %v471 = vmul.f32 %v468, %v470
        %v472 = vadd.f32 %v468, %v471
        %vm473 = vweird.f32 %v452
        %vm474 = vweird.f32 %v468
        %vm475 = vmor %vm473, %vm474
        %v476 = vsel %vm475, %v468, %v472
        %v477 = vand.u32 2147483647, %v452
        %vm478 = vcmp.eq.f32.partialorder %v477, 8.507059e+37
        %v479 = vand.u32 %v452, 2147483648
        %v480 = vor.u32 1.1754944e-38, %v479
        %v481 = vsel %vm478, %v480, %v476
        %v482 = vmul.f32 %v450, %v481
        %v483 = vld [vmem:[%s4] sm:$0x1]
        %v485 = vperm.slane %v483, 0
        %v487 = vadd.f32 %v467, %v485
        %v488 = vadd.f32 %v482, %v485
        %489 = vst [vmem:[%s234] sm:$0xff] %v487
        %490 = vst [vmem:[%s234 + $0x8] sm:$0xff] %v488
        %s491 = sand.u32 %s138, 1
        %s492 = scalar_lea.sflag [#allocation4], %s491
        %s493 = sand.u32 %s138, 1
        %s494 = smul.addr %s493, 16
        %s495 = scalar_lea.vmem [#allocation5], %s494
        // Predicated region
        $region45: #{tpu_custom_call.1} parent=39 // pred_check
          %p496 = pneg %p148
        $region46: #{tpu_custom_call.1} parent=39 // pred_check_branch
          %498 = sbr.rel (%p496) target = $region48
        $region47: #{tpu_custom_call.1} parent=39 // pred_region
          %500 = vsyncadd %s492, 0
          %s501 = smul.addr %s20, 2
          %s502 = smul.addr %s501, 8
          %s503 = scalar_lea.hbm %s5, %s502
          %s504 = sshll.u32 %s495, 4
          %s505 = int_to_ptr.vmem [resolvable:$true] %s504
          %s506 = sshll.u32 %s503, 4
          %s507 = int_to_ptr.hbm [resolvable:$true] %s506
          %512 = dma.vmem_to_hbm [thread:$0]  %s505, 256, %s507, %s492, 128, 128, 8
        $region48: #{tpu_custom_call.1} parent=39 // pred_fallthru
          _
      $region40: #{tpu_custom_call.1} parent=5 // pred_fallthru
        _
      %p513 = scmp.le.s32.totalorder 2, %s15
      // Predicated region
      $region49: #{tpu_custom_call.1} parent=5 // pred_check
        %p514 = pneg %p513
      $region50: #{tpu_custom_call.1} parent=5 // pred_check_branch
        %516 = sbr.rel (%p514) target = $region52
      $region51: #{tpu_custom_call.1} parent=5 // pred_region
        %s517 = ssub.s32 %s15, 2
        // Predicated region
        $region53: #{tpu_custom_call.1} parent=51 // pred_check
          %p518 = pneg %p154
        $region54: #{tpu_custom_call.1} parent=51 // pred_check_branch
          %520 = sbr.rel (%p518) target = $region56
        $region55: #{tpu_custom_call.1} parent=51 // pred_region
          %s521 = sand.u32 %s139, 1
          %s522 = scalar_lea.sflag [#allocation4], %s521
          %s523 = sand.u32 %s139, 1
          %s524 = smul.addr %s523, 16
          %s525 = scalar_lea.vmem [#allocation5], %s524
          %527 = dma.done %s522, 256
        $region56: #{tpu_custom_call.1} parent=51 // pred_fallthru
          _
      $region52: #{tpu_custom_call.1} parent=5 // pred_fallthru
        _
    $region6: #{tpu_custom_call.1} parent=1 // loop_footer
      %s19 = sadd.s32 1, %s15
    $region7: #{tpu_custom_call.1} parent=1 // loop_footer_branch
      %14 = sbr.rel target = $region3
    $region8: #{tpu_custom_call.1} parent=1 // loop_exit
      _
    %528 = vsyncpa [#allocation3], 1
    %s529 = scalar_lea.sflag [#allocation3], 1
    %530 = vsyncpa %s529, 1
    %531 = vsyncpa [#allocation4], 1
    %s532 = scalar_lea.sflag [#allocation4], 1
    %533 = vsyncpa %s532, 1

</llo_original>
